<compile_context>
chip_gen: v7x
topology: tpu7x:2x2x1
jax: 0.10.0
libtpu: 0.0.40
codegen_flags: <defaults>
</compile_context>

<pallas_src>
import jax
import jax.numpy as jnp
from jax.experimental import pallas as pl
from jax.experimental.pallas import tpu as pltpu


def fused_conv_relu_bn_kernel(cols_ref, w_ref, gamma_ref, beta_ref, o_ref):
    """Fused 3x3 conv (as im2col matmul) + ReLU + BatchNorm2d (training stats).

    cols_ref:  (9*Ci, N*H*W)  bf16   im2col columns, rows ordered (kh, kw, ci),
                                     columns ordered (n, h, w)
    w_ref:     (Co, 9*Ci)     bf16   conv weight, cols ordered (kh, kw, ci)
    gamma_ref: (Co, 1)        f32    BN affine scale
    beta_ref:  (Co, 1)        f32    BN affine shift
    o_ref:     (N, Co, H*W)   f32    output (lane-dense on H*W)
    """
    N, Co, HW = o_ref.shape
    inv_cnt = 1.0 / float(N * HW)

    # Single batched MXU dot: bf16 x bf16 -> f32 accumulation, (Co, N*HW).
    y = jnp.dot(w_ref[...], cols_ref[...], preferred_element_type=jnp.float32)
    y = jnp.maximum(y, 0.0)                                   # fused ReLU

    # Training-mode BatchNorm2d: batch statistics over (N, H, W), biased
    # variance, eps = 1e-5. Centered two-pass variance while y is in registers.
    mean = jnp.sum(y, axis=-1, keepdims=True) * inv_cnt       # (Co, 1)
    d = y - mean
    var = jnp.sum(d * d, axis=-1, keepdims=True) * inv_cnt    # (Co, 1)
    inv_std = jax.lax.rsqrt(var + 1e-5)                       # EUP transcendental
    scale = gamma_ref[...] * inv_std                          # (Co, 1)
    shift = beta_ref[...] - mean * scale                      # (Co, 1)

    yn = y * scale + shift                                    # one lane-dense FMA

    # (Co, N*HW) -> (N, Co, HW): N is tiny & static, slices are 128-aligned
    # lane windows -> unmasked stores, no transpose needed anywhere.
    for n in range(N):
        o_ref[n] = yn[:, n * HW:(n + 1) * HW]


def conv_layer_forward(x_nchw, weight_oihw, gamma, beta):
    """ConvLayer forward: Conv2d(3x3, s=1, p=1, no bias) -> ReLU -> BatchNorm2d.

    x_nchw:      (N, Ci, H, W)  float32  (PyTorch layout)
    weight_oihw: (Co, Ci, 3, 3) float32  (PyTorch Conv2d weight layout)
    gamma, beta: (Co,)          float32
    returns:     (N, Co, H, W)  float32
    """
    # TODO(synk): BatchNorm2d running_mean / running_var (training-mode side
    # state) are not produced; only the normalized forward output is computed.
    N, Ci, H, W = x_nchw.shape
    Co, _, KH, KW = weight_oihw.shape
    HW = H * W

    # Weight: (Co, Ci, KH, KW) -> (Co, KH*KW*Ci), column order (kh, kw, ci).
    w2 = jnp.transpose(weight_oihw, (0, 2, 3, 1)).reshape(Co, KH * KW * Ci)
    w2 = w2.astype(jnp.bfloat16)

    # im2col in the XLA wrapper (pure layout plumbing): rows (kh, kw, ci),
    # columns (n, h, w) -> lane-dense RHS for a single batched MXU dot.
    xpad = jnp.pad(x_nchw.astype(jnp.float32), ((0, 0), (0, 0), (1, 1), (1, 1)))
    taps = [xpad[:, :, kh:kh + H, kw:kw + W]
            for kh in range(KH) for kw in range(KW)]           # 9 x (N,Ci,H,W)
    cols = jnp.stack(taps, axis=0)                             # (9, N, Ci, H, W)
    cols = jnp.transpose(cols, (0, 2, 1, 3, 4)).reshape(KH * KW * Ci, N * HW)
    cols = cols.astype(jnp.bfloat16)

    # VMEM limit sized from the actual resident buffers (+ headroom), min 16 MiB
    # (<= every chip's physical / default scoped VMEM, so always safe).
    bytes_resident = (cols.size * 2 + w2.size * 2 + 2 * Co * 4   # inputs (bf16 / f32)
                      + N * Co * HW * 4)                         # output (f32)
    vmem_limit = max(4 * bytes_resident + (4 << 20), 16 << 20)

    out = pl.pallas_call(
        fused_conv_relu_bn_kernel,
        out_shape=jax.ShapeDtypeStruct((N, Co, HW), jnp.float32),
        in_specs=[
            pl.BlockSpec(memory_space=pltpu.MemorySpace.VMEM),   # cols
            pl.BlockSpec(memory_space=pltpu.MemorySpace.VMEM),   # w2
            pl.BlockSpec(memory_space=pltpu.MemorySpace.VMEM),   # gamma
            pl.BlockSpec(memory_space=pltpu.MemorySpace.VMEM),   # beta
        ],
        out_specs=pl.BlockSpec(memory_space=pltpu.MemorySpace.VMEM),
        compiler_params=pltpu.CompilerParams(vmem_limit_bytes=int(vmem_limit)),
    )(cols, w2,
      gamma.reshape(Co, 1).astype(jnp.float32),
      beta.reshape(Co, 1).astype(jnp.float32))

    # (N, Co, H*W) -> (N, Co, H, W): contiguous reshape, already NCHW.
    return out.reshape(N, Co, H, W)


if __name__ == "__main__":
    key = jax.random.PRNGKey(0)
    kx, kw = jax.random.split(key)

    # Small shapes consistent with the module: ConvLayer(ni=4, nf=8).
    N, Ci, H, W = 2, 4, 16, 16
    Co, K = 8, 3

    x = jax.random.normal(kx, (N, Ci, H, W), dtype=jnp.float32)

    # Deterministic conv weight init (kaiming-like uniform bound), no bias.
    fan_in = Ci * K * K
    bound = (1.0 / fan_in) ** 0.5
    w_oihw = jax.random.uniform(kw, (Co, Ci, K, K), jnp.float32, -bound, bound)

    # BatchNorm2d default affine init: gamma=1, beta=0.
    gamma = jnp.ones((Co,), jnp.float32)
    beta = jnp.zeros((Co,), jnp.float32)

    out = conv_layer_forward(x, w_oihw, gamma, beta)
    jax.block_until_ready(out)
    assert out.shape == (N, Co, H, W), out.shape
    print("KERNEL_OK")
</pallas_src>

<mosaic_0001>
module attributes {stable_mosaic.version = 11 : i64} {
  func.func @fused_conv_relu_bn_kernel(%arg0: memref<36x512xbf16, #tpu.memory_space<vmem>>, %arg1: memref<8x36xbf16, #tpu.memory_space<vmem>>, %arg2: memref<8x1xf32, #tpu.memory_space<vmem>>, %arg3: memref<8x1xf32, #tpu.memory_space<vmem>>, %arg4: memref<2x8x256xf32, #tpu.memory_space<vmem>>) attributes {dimension_semantics = [], scalar_prefetch = 0 : i64, scratch_operands = 0 : i64, tpu.core_type = #tpu.core_type<tc>} {
    %c0 = arith.constant 0 : index
    %c0_0 = arith.constant 0 : index
    %0 = vector.load %arg1[%c0, %c0_0] : memref<8x36xbf16, #tpu.memory_space<vmem>>, vector<8x36xbf16>
    %c0_1 = arith.constant 0 : index
    %c0_2 = arith.constant 0 : index
    %1 = vector.load %arg0[%c0_1, %c0_2] : memref<36x512xbf16, #tpu.memory_space<vmem>>, vector<36x512xbf16>
    %cst = arith.constant dense<0.000000e+00> : vector<8x512xf32>
    %2 = tpu.matmul %0, %1, %cst {dimension_numbers = #tpu.dot_dimension_numbers<[1], [0], [0], [1], [0, 0, 1, 1], [], []>} : vector<8x36xbf16>, vector<36x512xbf16>, vector<8x512xf32> -> vector<8x512xf32>
    %cst_3 = arith.constant 0.000000e+00 : f32
    %3 = vector.broadcast %cst_3 : f32 to vector<8x512xf32>
    %4 = arith.maximumf %2, %3 : vector<8x512xf32>
    %cst_4 = arith.constant dense<0.000000e+00> : vector<8xf32>
    %5 = vector.multi_reduction <add>, %4, %cst_4 [1] : vector<8x512xf32> to vector<8xf32>
    %6 = vector.shape_cast %5 : vector<8xf32> to vector<8x1xf32>
    %cst_5 = arith.constant 0.001953125 : f32
    %7 = vector.broadcast %cst_5 : f32 to vector<8x1xf32>
    %8 = arith.mulf %6, %7 : vector<8x1xf32>
    %9 = vector.broadcast %8 : vector<8x1xf32> to vector<8x512xf32>
    %10 = arith.subf %4, %9 : vector<8x512xf32>
    %11 = arith.mulf %10, %10 : vector<8x512xf32>
    %cst_6 = arith.constant dense<0.000000e+00> : vector<8xf32>
    %12 = vector.multi_reduction <add>, %11, %cst_6 [1] : vector<8x512xf32> to vector<8xf32>
    %13 = vector.shape_cast %12 : vector<8xf32> to vector<8x1xf32>
    %cst_7 = arith.constant 0.001953125 : f32
    %14 = vector.broadcast %cst_7 : f32 to vector<8x1xf32>
    %15 = arith.mulf %13, %14 : vector<8x1xf32>
    %cst_8 = arith.constant 9.99999974E-6 : f32
    %16 = vector.broadcast %cst_8 : f32 to vector<8x1xf32>
    %17 = arith.addf %15, %16 : vector<8x1xf32>
    %18 = math.rsqrt %17 : vector<8x1xf32>
    %c0_9 = arith.constant 0 : index
    %c0_10 = arith.constant 0 : index
    %19 = vector.load %arg2[%c0_9, %c0_10] : memref<8x1xf32, #tpu.memory_space<vmem>>, vector<8x1xf32>
    %20 = arith.mulf %19, %18 : vector<8x1xf32>
    %c0_11 = arith.constant 0 : index
    %c0_12 = arith.constant 0 : index
    %21 = vector.load %arg3[%c0_11, %c0_12] : memref<8x1xf32, #tpu.memory_space<vmem>>, vector<8x1xf32>
    %22 = arith.mulf %8, %20 : vector<8x1xf32>
    %23 = arith.subf %21, %22 : vector<8x1xf32>
    %24 = vector.broadcast %20 : vector<8x1xf32> to vector<8x512xf32>
    %25 = arith.mulf %4, %24 : vector<8x512xf32>
    %26 = vector.broadcast %23 : vector<8x1xf32> to vector<8x512xf32>
    %27 = arith.addf %25, %26 : vector<8x512xf32>
    %28 = vector.extract_strided_slice %27 {offsets = [0, 0], sizes = [8, 256], strides = [1, 1]} : vector<8x512xf32> to vector<8x256xf32>
    %c0_13 = arith.constant 0 : index
    %c0_14 = arith.constant 0 : index
    %c0_15 = arith.constant 0 : index
    %29 = vector.load %arg4[%c0_13, %c0_14, %c0_15] : memref<2x8x256xf32, #tpu.memory_space<vmem>>, vector<1x8x256xf32>
    %30 = vector.shape_cast %29 : vector<1x8x256xf32> to vector<8x256xf32>
    %31 = vector.shape_cast %28 : vector<8x256xf32> to vector<1x8x256xf32>
    tpu.vector_store %arg4[%c0_13, %c0_14, %c0_15], %31 {strides = array<i32>} : memref<2x8x256xf32, #tpu.memory_space<vmem>>, vector<1x8x256xf32>,
    %32 = vector.extract_strided_slice %27 {offsets = [0, 256], sizes = [8, 256], strides = [1, 1]} : vector<8x512xf32> to vector<8x256xf32>
    %c1 = arith.constant 1 : index
    %c0_16 = arith.constant 0 : index
    %c0_17 = arith.constant 0 : index
    %33 = vector.load %arg4[%c1, %c0_16, %c0_17] : memref<2x8x256xf32, #tpu.memory_space<vmem>>, vector<1x8x256xf32>
    %34 = vector.shape_cast %33 : vector<1x8x256xf32> to vector<8x256xf32>
    %35 = vector.shape_cast %32 : vector<8x256xf32> to vector<1x8x256xf32>
    tpu.vector_store %arg4[%c1, %c0_16, %c0_17], %35 {strides = array<i32>} : memref<2x8x256xf32, #tpu.memory_space<vmem>>, vector<1x8x256xf32>,
    return
  }
}

</mosaic_0001>

<llo_original>
// kernel: tpu_custom_call.1
$region0: #{tpu_custom_call.1}
  #allocation0 [shape = 'u32[]', space=smem, size = 0x4, offset = 0x4, fixed_abs, tag = 'smem constant byte address 0x4 - core index']
  #allocation1 [shape = 'u32[144,128]{1,0:T(1,128)}', space=vmem, size = 0x12000, scoped, tag = 'internal scratch']
  %s0 = inlined_call_operand.hbm [shape: bf16[36,512], index: 0, kind: input, shape index: {}]
  %s1 = inlined_call_operand.vmem [shape: bf16[8,36], index: 1, kind: input, shape index: {}]
  %s2 = inlined_call_operand.vmem [shape: f32[8,1], index: 2, kind: input, shape index: {}]
  %s3 = inlined_call_operand.vmem [shape: f32[8,1], index: 3, kind: input, shape index: {}]
  %s4 = inlined_call_operand.hbm [shape: f32[2,8,256], index: 4, kind: output, shape index: {}]
  %s5 = sld [smem:[#allocation0]]
  $region30: #{tpu_custom_call.1} parent=0
    _
  %s7 = ssub.s32 1, %s5
  %s8 = scalar_select 0, %s7, %s5
  $region1: #{tpu_custom_call.1} parent=0
    #allocation2 [shape = 'u8[40960]{0}', space=vmem, size = 0xa000, scoped, tag = 'input window, operand 0, single buffered']
    #allocation3 [shape = 's32[1]{0}', space=sflag, size = 0x4, scoped, tag = 'scoped memory for tpu_custom_call.1']
    #allocation4 [shape = 's32[1]{0}', space=sflag, size = 0x4, scoped, tag = 'scoped memory for tpu_custom_call.1']
    #allocation5 [shape = 'u8[16384]{0}', space=vmem, size = 0x4000, scoped, tag = 'output window, operand 0, single buffered']
    %9 = vsyncpa [#allocation3], 0
    %10 = vsyncpa [#allocation4], 0
    // Predicated region
    $region2: #{tpu_custom_call.1} parent=1 // pred_check
      _
    $region3: #{tpu_custom_call.1} parent=1 // pred_check_branch
      %12 = sbr.rel (0) target = $region5
    $region4: #{tpu_custom_call.1} parent=1 // pred_region
      %s14 = ssub.s32 1280, 1280
      %15 = vsyncadd [#allocation3], %s14
      %s16 = sshll.u32 [#allocation2], 4
      %s17 = int_to_ptr.vmem [resolvable:$true] %s16
      %22 = dma.hbm_to_vmem [thread:$0]  %s0, 1280, %s17, [#allocation3], 256, 256, 16
    $region5: #{tpu_custom_call.1} parent=1 // pred_fallthru
      _
    // Predicated region
    $region6: #{tpu_custom_call.1} parent=1 // pred_check
      _
    $region7: #{tpu_custom_call.1} parent=1 // pred_check_branch
      %24 = sbr.rel (0) target = $region9
    $region8: #{tpu_custom_call.1} parent=1 // pred_region
      _
    $region9: #{tpu_custom_call.1} parent=1 // pred_fallthru
      _
    // Predicated region
    $region10: #{tpu_custom_call.1} parent=1 // pred_check
      _
    $region11: #{tpu_custom_call.1} parent=1 // pred_check_branch
      %26 = sbr.rel (0) target = $region13
    $region12: #{tpu_custom_call.1} parent=1 // pred_region
      _
    $region13: #{tpu_custom_call.1} parent=1 // pred_fallthru
      _
    // Predicated region
    $region14: #{tpu_custom_call.1} parent=1 // pred_check
      _
    $region15: #{tpu_custom_call.1} parent=1 // pred_check_branch
      %28 = sbr.rel (0) target = $region17
    $region16: #{tpu_custom_call.1} parent=1 // pred_region
      _
    $region17: #{tpu_custom_call.1} parent=1 // pred_fallthru
      _
    // Predicated region
    $region18: #{tpu_custom_call.1} parent=1 // pred_check
      _
    $region19: #{tpu_custom_call.1} parent=1 // pred_check_branch
      %30 = sbr.rel (0) target = $region21
    $region20: #{tpu_custom_call.1} parent=1 // pred_region
      %31 = dma.done [#allocation3], 1280
    $region21: #{tpu_custom_call.1} parent=1 // pred_fallthru
      _
    %v33 = vld [vmem:[%s1] sm:$0xf]
    %v34 = vld [vmem:[#allocation2] sm:$0xff]
    %v35 = vld [vmem:[#allocation2 + $0x8] sm:$0xff]
    %v36 = vld [vmem:[#allocation2 + $0x10] sm:$0xff]
    %v37 = vld [vmem:[#allocation2 + $0x18] sm:$0xff]
    %v38 = vld [vmem:[#allocation2 + $0x20] sm:$0xff]
    %v39 = vld [vmem:[#allocation2 + $0x28] sm:$0xff]
    %v40 = vld [vmem:[#allocation2 + $0x30] sm:$0xff]
    %v41 = vld [vmem:[#allocation2 + $0x38] sm:$0xff]
    %v42 = vld [vmem:[#allocation2 + $0x40] sm:$0x33]
    %v43 = vld [vmem:[#allocation2 + $0x48] sm:$0x33]
    %v54 = vunpack.c.l.b16 %v34
    %v55 = vunpack.c.h.b16 %v34
    %v56 = vunpack.c.l.b16 %v35
    %v57 = vunpack.c.h.b16 %v35
    %v58 = vunpack.c.l.b16 %v36
    %v59 = vunpack.c.h.b16 %v36
    %v60 = vunpack.c.l.b16 %v37
    %v61 = vunpack.c.h.b16 %v37
    %v62 = vunpack.c.l.b16 %v38
    %v63 = vunpack.c.h.b16 %v38
    %v64 = vunpack.c.l.b16 %v39
    %v65 = vunpack.c.h.b16 %v39
    %v66 = vunpack.c.l.b16 %v40
    %v67 = vunpack.c.h.b16 %v40
    %v68 = vunpack.c.l.b16 %v41
    %v69 = vunpack.c.h.b16 %v41
    %v70 = vunpack.c.l.b16 %v42
    %v71 = vunpack.c.h.b16 %v42
    %v72 = vunpack.c.l.b16 %v43
    %v73 = vunpack.c.h.b16 %v43
    %v74 = vpack.c.b16 %v58, %v54
    %v75 = vpack.c.b16 %v59, %v55
    %v76 = vpack.c.b16 %v60, %v56
    %v77 = vpack.c.b16 %v61, %v57
    %v78 = vpack.c.b16 %v66, %v62
    %v79 = vpack.c.b16 %v67, %v63
    %v80 = vpack.c.b16 %v68, %v64
    %v81 = vpack.c.b16 %v69, %v65
    %v82 = vpack.c.b16 %v70, %v70
    %v83 = vpack.c.b16 %v71, %v71
    %v84 = vpack.c.b16 %v72, %v72
    %v85 = vpack.c.b16 %v73, %v73
    %vm94 = vcmask 293888
    %v96 = vsel %vm94, %v33, 0
    %vm98 = vcmask 1041408
    %v100 = vsel %vm98, %v82, 0
    %v103 = vsel %vm98, %v83, 0
    %v106 = vsel %vm98, %v84, 0
    %v109 = vsel %vm98, %v85, 0
    %111 = vmatprep.subr.bf16.mxu0 %v75
    %112 = vmatpush1.bf16.msra.mxu0 %v74
    %113 = vmatprep.subr.bf16.mxu0 %v79
    %114 = vmatpush1.bf16.msra.mxu0 %v78
    %115 = vmatprep.subr.bf16.mxu0 %v103
    %116 = vmatpush1.bf16.msra.mxu0 %v100
    %117 = vmatprep.subr.bf16.mxu0 0
    %118 = vmatpush1.bf16.msra.mxu0 0
    %119 = vmatprep.subr.bf16.mxu0 0
    %120 = vmatpush1.bf16.msra.mxu0 0
    %121 = vmatprep.subr.bf16.mxu0 0
    %122 = vmatpush1.bf16.msra.mxu0 0
    %123 = vmatprep.subr.bf16.mxu0 0
    %124 = vmatpush1.bf16.msra.mxu0 0
    %125 = vmatprep.subr.bf16.mxu0 0
    %126 = vmatpush1.bf16.msra.mxu0 0
    %127 = vmatprep.subr.bf16.mxu0 0
    %128 = vmatpush1.bf16.msra.mxu0 0
    %129 = vmatprep.subr.bf16.mxu0 0
    %130 = vmatpush1.bf16.msra.mxu0 0
    %131 = vmatprep.subr.bf16.mxu0 0
    %132 = vmatpush1.bf16.msra.mxu0 0
    %133 = vmatprep.subr.bf16.mxu0 0
    %134 = vmatpush1.bf16.msra.mxu0 0
    %135 = vmatprep.subr.bf16.mxu0 0
    %136 = vmatpush1.bf16.msra.mxu0 0
    %137 = vmatprep.subr.bf16.mxu0 0
    %138 = vmatpush1.bf16.msra.mxu0 0
    %139 = vmatprep.subr.bf16.mxu0 0
    %140 = vmatpush1.bf16.msra.mxu0 0
    %141 = vmatprep.subr.bf16.mxu0 0
    %142 = vmatpush1.bf16.msra.mxu0 0
    %143 = vmatprep.mubr.bf16.mxu0 0
    %144 = vmatmul.mubr.bf16.gmra.mrb[0].mxu0 %v96
    %v145 = vpop.f32.mrb[0].mxu0
    %v146 = vadd.f32 0.0, %v145
    %v147 = vpop.f32.mrb[0].mxu0
    %v148 = vadd.f32 0.0, %v147
    %v149 = vpop.f32.mrb[0].mxu0
    %v150 = vpop.f32.mrb[0].mxu0
    %151 = vdwg.mxu0
    %152 = vmatprep.subr.bf16.mxu0 %v77
    %153 = vmatpush1.bf16.msra.mxu0 %v76
    %154 = vmatprep.subr.bf16.mxu0 %v81
    %155 = vmatpush1.bf16.msra.mxu0 %v80
    %156 = vmatprep.subr.bf16.mxu0 %v109
    %157 = vmatpush1.bf16.msra.mxu0 %v106
    %158 = vmatprep.subr.bf16.mxu0 0
    %159 = vmatpush1.bf16.msra.mxu0 0
    %160 = vmatprep.subr.bf16.mxu0 0
    %161 = vmatpush1.bf16.msra.mxu0 0
    %162 = vmatprep.subr.bf16.mxu0 0
    %163 = vmatpush1.bf16.msra.mxu0 0
    %164 = vmatprep.subr.bf16.mxu0 0
    %165 = vmatpush1.bf16.msra.mxu0 0
    %166 = vmatprep.subr.bf16.mxu0 0
    %167 = vmatpush1.bf16.msra.mxu0 0
    %168 = vmatprep.subr.bf16.mxu0 0
    %169 = vmatpush1.bf16.msra.mxu0 0
    %170 = vmatprep.subr.bf16.mxu0 0
    %171 = vmatpush1.bf16.msra.mxu0 0
    %172 = vmatprep.subr.bf16.mxu0 0
    %173 = vmatpush1.bf16.msra.mxu0 0
    %174 = vmatprep.subr.bf16.mxu0 0
    %175 = vmatpush1.bf16.msra.mxu0 0
    %176 = vmatprep.subr.bf16.mxu0 0
    %177 = vmatpush1.bf16.msra.mxu0 0
    %178 = vmatprep.subr.bf16.mxu0 0
    %179 = vmatpush1.bf16.msra.mxu0 0
    %180 = vmatprep.subr.bf16.mxu0 0
    %181 = vmatpush1.bf16.msra.mxu0 0
    %182 = vmatprep.subr.bf16.mxu0 0
    %183 = vmatpush1.bf16.msra.mxu0 0
    %184 = vmatprep.mubr.bf16.mxu0 0
    %185 = vmatmul.mubr.bf16.gmra.mrb[0].mxu0 %v96
    %v186 = vpop.f32.mrb[0].mxu0
    %v187 = vadd.f32 0.0, %v186
    %v188 = vpop.f32.mrb[0].mxu0
    %v189 = vadd.f32 0.0, %v188
    %v190 = vpop.f32.mrb[0].mxu0
    %v191 = vpop.f32.mrb[0].mxu0
    %192 = vdwg.mxu0
    %v193 = vmax.f32 %v146, 0.0
    %v194 = vmax.f32 %v148, 0.0
    %v195 = vmax.f32 %v187, 0.0
    %v196 = vmax.f32 %v189, 0.0
    %v197 = vadd.f32 %v193, %v194
    %v198 = vadd.f32 %v197, %v195
    %v199 = vadd.f32 %v198, %v196
    %200 = vadd.xlane.f32.xlu0 %v199
    %v201 = vpop.xlane.xlu0 %200
    %v202 = vmul.f32 %v201, 0.001953125
    %v203 = vsub.f32 %v193, %v202
    %v204 = vsub.f32 %v194, %v202
    %v205 = vsub.f32 %v195, %v202
    %v206 = vsub.f32 %v196, %v202
    %v207 = vmul.f32 %v203, %v203
    %v208 = vmul.f32 %v204, %v204
    %v209 = vmul.f32 %v205, %v205
    %v210 = vmul.f32 %v206, %v206
    %v211 = vadd.f32 %v207, %v208
    %v212 = vadd.f32 %v211, %v209
    %v213 = vadd.f32 %v212, %v210
    %214 = vadd.xlane.f32.xlu0 %v213
    %v215 = vpop.xlane.xlu0 %214
    %v216 = vmul.f32 %v215, 0.001953125
    %v217 = vadd.f32 %v216, 1e-05
    %v218 = vrsqrt.pop %v217
    %v219 = vld [vmem:[%s2] sm:$0xff]
    %v220 = vmul.f32 %v219, %v218
    %v221 = vld [vmem:[%s3] sm:$0xff]
    %v222 = vmul.f32 %v202, %v220
    %v223 = vsub.f32 %v221, %v222
    %225 = vset.pattern.permute.xlu0 0
    %226 = vperm.xlu0 %225, %v220
    %v227 = vpop.permute.xlu0 %226
    %v229 = vmul.f32 %v193, %v227
    %v230 = vmul.f32 %v194, %v227
    %v231 = vmul.f32 %v195, %v227
    %v232 = vmul.f32 %v196, %v227
    %234 = vset.pattern.permute.xlu0 0
    %235 = vperm.xlu0 %234, %v223
    %v236 = vpop.permute.xlu0 %235
    %v238 = vadd.f32 %v229, %v236
    %v239 = vadd.f32 %v230, %v236
    %v240 = vadd.f32 %v231, %v236
    %v241 = vadd.f32 %v232, %v236
    %242 = vst [vmem:[#allocation5] sm:$0xff] %v238
    %243 = vst [vmem:[#allocation5 + $0x8] sm:$0xff] %v239
    %s244 = scalar_lea.vmem [#allocation5], 16
    %245 = vst [vmem:[%s244] sm:$0xff] %v240
    %246 = vst [vmem:[%s244 + $0x8] sm:$0xff] %v241
    // Predicated region
    $region22: #{tpu_custom_call.1} parent=1 // pred_check
      _
    $region23: #{tpu_custom_call.1} parent=1 // pred_check_branch
      %248 = sbr.rel (0) target = $region25
    $region24: #{tpu_custom_call.1} parent=1 // pred_region
      %s250 = ssub.s32 512, 512
      %251 = vsyncadd [#allocation4], %s250
      %s252 = sshll.u32 [#allocation5], 4
      %s253 = int_to_ptr.vmem [resolvable:$true] %s252
      %258 = dma.vmem_to_hbm [thread:$0]  %s253, 512, %s4, [#allocation4], 256, 256, 16
    $region25: #{tpu_custom_call.1} parent=1 // pred_fallthru
      _
    // Predicated region
    $region26: #{tpu_custom_call.1} parent=1 // pred_check
      _
    $region27: #{tpu_custom_call.1} parent=1 // pred_check_branch
      %260 = sbr.rel (0) target = $region29
    $region28: #{tpu_custom_call.1} parent=1 // pred_region
      %261 = dma.done [#allocation4], 512
    $region29: #{tpu_custom_call.1} parent=1 // pred_fallthru
      _
    %262 = vsyncpa [#allocation3], 1
    %263 = vsyncpa [#allocation4], 1

</llo_original>
